<compile_context>
chip_gen: v6e
topology: v6e:2x2x1
jax: 0.10.0
libtpu: 0.0.40
codegen_flags: <defaults>
</compile_context>

<pallas_src>
import jax
import jax.numpy as jnp
from jax.experimental import pallas as pl
from jax.experimental.pallas import tpu as pltpu

_LANE = 128
_SUBLANE = 8


def _round_up(n, m):
    return ((n + m - 1) // m) * m


def _mlp_kernel(x_ref, w1_ref, w2_ref, b_ref, o_ref):
    hid = w1_ref.shape[1]      # padded hidden width (lane multiple)
    act = w2_ref.shape[1]      # n_actions (unpadded)
    # First linear: (M, obs) @ (obs, hid) -> f32 accumulation on the MXU.
    x = x_ref[...].astype(w1_ref.dtype)
    h = jnp.dot(x, w1_ref[...], preferred_element_type=jnp.float32)
    # Bias add + ReLU in f32 (v5e VPU has no bf16; keep elementwise math f32).
    h = jnp.maximum(h + b_ref[0:1, 0:hid], 0.0)
    # Second linear: (M, hid) @ (hid, act) + b2.
    out = jnp.dot(h.astype(w2_ref.dtype), w2_ref[...],
                  preferred_element_type=jnp.float32)
    o_ref[...] = (out + b_ref[1:2, 0:act]).astype(o_ref.dtype)


def prepare_params(w1, b1, w2, b2, *, mat_dtype=jnp.bfloat16):
    """One-time parameter packing (hoisted out of the per-step forward path).

    w1: (obs, hidden)  b1: (hidden,)  w2: (hidden, n_actions)  b2: (n_actions,)

    Only the hidden dim is padded (to a 128-lane multiple); obs and n_actions
    stay unpadded.  Biases are packed into a single (8, width) f32 block where
    width = max(hid_p, n_actions), so the in-kernel slices are always in range.
    """
    obs, hidden = w1.shape
    n_actions = w2.shape[1]
    hid_p = _round_up(max(hidden, _LANE), _LANE)
    bias_w = max(hid_p, n_actions)

    w1_p = (jnp.zeros((obs, hid_p), mat_dtype)
            .at[:, :hidden].set(w1.astype(mat_dtype)))
    w2_p = (jnp.zeros((hid_p, n_actions), mat_dtype)
            .at[:hidden, :].set(w2.astype(mat_dtype)))
    bias = (jnp.zeros((_SUBLANE, bias_w), jnp.float32)
            .at[0, :hidden].set(b1.astype(jnp.float32))
            .at[1, :n_actions].set(b2.astype(jnp.float32)))
    return w1_p, w2_p, bias


def net_forward(x, params, *, num_tiles=1, vmem_limit_bytes=None):
    """Pallas forward pass of Net (Linear -> ReLU -> Linear).

    x: (B, obs) float32.  params: output of prepare_params.
    num_tiles=1  -> grid-less single tile (v5e/v6e, and v7x at small B).
    num_tiles=2  -> one batch tile per v7x TensorCore ("parallel" grid axis).
    Returns (B, n_actions) float32.
    """
    w1_p, w2_p, bias = params
    B, obs = x.shape
    n_actions = w2_p.shape[1]

    cp_kwargs = {}
    if vmem_limit_bytes is not None:
        cp_kwargs["vmem_limit_bytes"] = vmem_limit_bytes

    if num_tiles <= 1:
        # Grid-less: whole (unpadded) x / output plus packed weights live in
        # VMEM for the call; no per-grid-step pipeline bookkeeping.
        return pl.pallas_call(
            _mlp_kernel,
            out_shape=jax.ShapeDtypeStruct((B, n_actions), jnp.float32),
            compiler_params=pltpu.CompilerParams(**cp_kwargs),
        )(x, w1_p, w2_p, bias)

    # Batch-tiled path: exactly `num_tiles` grid steps (one per TensorCore on
    # v7x).  Weights/bias use a constant index_map -> VMEM-resident across
    # tiles.  Blocks are legal: sublane dims are 8-multiples or full-extent,
    # lane dims are full-extent (obs / n_actions) or 128-multiples (hid_p).
    tile_m = _round_up(pl.cdiv(B, num_tiles), _SUBLANE)
    b_p = num_tiles * tile_m
    x_p = x if b_p == B else jnp.zeros((b_p, obs), x.dtype).at[:B].set(x)

    out = pl.pallas_call(
        _mlp_kernel,
        out_shape=jax.ShapeDtypeStruct((b_p, n_actions), jnp.float32),
        grid=(num_tiles,),
        in_specs=[
            pl.BlockSpec((tile_m, obs), lambda i: (i, 0)),
            pl.BlockSpec(w1_p.shape, lambda i: (0, 0)),
            pl.BlockSpec(w2_p.shape, lambda i: (0, 0)),
            pl.BlockSpec(bias.shape, lambda i: (0, 0)),
        ],
        out_specs=pl.BlockSpec((tile_m, n_actions), lambda i: (i, 0)),
        compiler_params=pltpu.CompilerParams(
            dimension_semantics=("parallel",), **cp_kwargs),
    )(x_p, w1_p, w2_p, bias)

    # Padded batch rows compute relu(b1) @ w2 + b2 (not inert) -> slice off.
    return out if b_p == B else out[:B]


def init_params(key, obs_size, hidden_size, n_actions):
    """Deterministic init matching PyTorch Linear's U(-1/sqrt(fan_in), 1/sqrt(fan_in))."""
    k1, k2, k3, k4 = jax.random.split(key, 4)
    lim1 = 1.0 / jnp.sqrt(jnp.float32(obs_size))
    lim2 = 1.0 / jnp.sqrt(jnp.float32(hidden_size))
    w1 = jax.random.uniform(k1, (obs_size, hidden_size), jnp.float32, -lim1, lim1)
    b1 = jax.random.uniform(k2, (hidden_size,), jnp.float32, -lim1, lim1)
    w2 = jax.random.uniform(k3, (hidden_size, n_actions), jnp.float32, -lim2, lim2)
    b2 = jax.random.uniform(k4, (n_actions,), jnp.float32, -lim2, lim2)
    return w1, b1, w2, b2


def _reference(x, w1, b1, w2, b2):
    return jnp.maximum(x @ w1 + b1, 0.0) @ w2 + b2


if __name__ == "__main__":
    # Small shapes consistent with the module (CartPole-style agent).
    batch, obs_size, hidden_size, n_actions = 8, 4, 32, 2

    key = jax.random.PRNGKey(0)
    kx, kp, kb = jax.random.split(key, 3)
    x = jax.random.normal(kx, (batch, obs_size), jnp.float32)
    w1, b1, w2, b2 = init_params(kp, obs_size, hidden_size, n_actions)
    ref = _reference(x, w1, b1, w2, b2)

    # 1) f32 path, grid-less (single-TC default) -> exact match.
    params_f32 = prepare_params(w1, b1, w2, b2, mat_dtype=jnp.float32)
    out = jax.block_until_ready(net_forward(x, params_f32))
    assert out.shape == (batch, n_actions)
    assert jnp.allclose(out, ref, atol=1e-5, rtol=1e-5)

    # 2) bf16 MXU-input path (default for v6e/v7x): f32 accumulation, looser tol.
    params_bf16 = prepare_params(w1, b1, w2, b2)  # mat_dtype=bfloat16
    out_bf = jax.block_until_ready(net_forward(x, params_bf16))
    assert out_bf.shape == (batch, n_actions)
    assert jnp.allclose(out_bf, ref, atol=5e-2, rtol=5e-2)

    # 3) v7x-style two-tile path (one tile per TensorCore; correct-but-serial
    #    on single-TC chips).  Batch deliberately not a multiple of the tile.
    big_batch = 1000
    xb = jax.random.normal(kb, (big_batch, obs_size), jnp.float32)
    refb = _reference(xb, w1, b1, w2, b2)
    out_b = jax.block_until_ready(net_forward(xb, params_f32, num_tiles=2))
    assert out_b.shape == (big_batch, n_actions)
    assert jnp.allclose(out_b, refb, atol=1e-5, rtol=1e-5)

    print("KERNEL_OK")
</pallas_src>

<mosaic_0001>
module attributes {stable_mosaic.version = 11 : i64} {
  func.func @_mlp_kernel(%arg0: memref<8x4xf32, #tpu.memory_space<vmem>>, %arg1: memref<4x128xf32, #tpu.memory_space<vmem>>, %arg2: memref<128x2xf32, #tpu.memory_space<vmem>>, %arg3: memref<8x128xf32, #tpu.memory_space<vmem>>, %arg4: memref<8x2xf32, #tpu.memory_space<vmem>>) attributes {dimension_semantics = [], scalar_prefetch = 0 : i64, scratch_operands = 0 : i64, tpu.core_type = #tpu.core_type<tc>} {
    %c0 = arith.constant 0 : index
    %c0_0 = arith.constant 0 : index
    %0 = vector.load %arg0[%c0, %c0_0] : memref<8x4xf32, #tpu.memory_space<vmem>>, vector<8x4xf32>
    %c0_1 = arith.constant 0 : index
    %c0_2 = arith.constant 0 : index
    %1 = vector.load %arg1[%c0_1, %c0_2] : memref<4x128xf32, #tpu.memory_space<vmem>>, vector<4x128xf32>
    %cst = arith.constant dense<0.000000e+00> : vector<8x128xf32>
    %2 = tpu.matmul %0, %1, %cst {dimension_numbers = #tpu.dot_dimension_numbers<[1], [0], [0], [1], [0, 0, 1, 1], [], []>} : vector<8x4xf32>, vector<4x128xf32>, vector<8x128xf32> -> vector<8x128xf32>
    %c0_3 = arith.constant 0 : index
    %c0_4 = arith.constant 0 : index
    %3 = vector.load %arg3[%c0_3, %c0_4] : memref<8x128xf32, #tpu.memory_space<vmem>>, vector<1x128xf32>
    %4 = vector.broadcast %3 : vector<1x128xf32> to vector<8x128xf32>
    %5 = arith.addf %2, %4 : vector<8x128xf32>
    %cst_5 = arith.constant 0.000000e+00 : f32
    %6 = vector.broadcast %cst_5 : f32 to vector<8x128xf32>
    %7 = arith.maximumf %5, %6 : vector<8x128xf32>
    %c0_6 = arith.constant 0 : index
    %c0_7 = arith.constant 0 : index
    %8 = vector.load %arg2[%c0_6, %c0_7] : memref<128x2xf32, #tpu.memory_space<vmem>>, vector<128x2xf32>
    %cst_8 = arith.constant dense<0.000000e+00> : vector<8x2xf32>
    %9 = tpu.matmul %7, %8, %cst_8 {dimension_numbers = #tpu.dot_dimension_numbers<[1], [0], [0], [1], [0, 0, 1, 1], [], []>} : vector<8x128xf32>, vector<128x2xf32>, vector<8x2xf32> -> vector<8x2xf32>
    %c1 = arith.constant 1 : index
    %c0_9 = arith.constant 0 : index
    %10 = vector.load %arg3[%c1, %c0_9] : memref<8x128xf32, #tpu.memory_space<vmem>>, vector<1x2xf32>
    %11 = vector.broadcast %10 : vector<1x2xf32> to vector<8x2xf32>
    %12 = arith.addf %9, %11 : vector<8x2xf32>
    %c0_10 = arith.constant 0 : index
    %c0_11 = arith.constant 0 : index
    %13 = vector.load %arg4[%c0_10, %c0_11] : memref<8x2xf32, #tpu.memory_space<vmem>>, vector<8x2xf32>
    tpu.vector_store %arg4[%c0_10, %c0_11], %12 {strides = array<i32>} : memref<8x2xf32, #tpu.memory_space<vmem>>, vector<8x2xf32>,
    return
  }
}

</mosaic_0001>

<llo_original>
// kernel: tpu_custom_call.1
$region0: #{tpu_custom_call.1}
  #allocation0 [shape = 'u32[]', space=smem, size = 0x4, offset = 0x4, fixed_abs, tag = 'smem constant byte address 0x4 - core index']
  #allocation1 [shape = 'u32[144,128]{1,0:T(1,128)}', space=vmem, size = 0x12000, scoped, tag = 'internal scratch']
  %s0 = inlined_call_operand.vmem [shape: f32[8,4], index: 0, kind: input, shape index: {}]
  %s1 = inlined_call_operand.vmem [shape: f32[4,128], index: 1, kind: input, shape index: {}]
  %s2 = inlined_call_operand.vmem [shape: f32[128,2], index: 2, kind: input, shape index: {}]
  %s3 = inlined_call_operand.vmem [shape: f32[8,128], index: 3, kind: input, shape index: {}]
  %s4 = inlined_call_operand.vmem [shape: f32[8,2], index: 4, kind: output, shape index: {}]
  %s5 = sld [smem:[#allocation0]]
  $region26: #{tpu_custom_call.1} parent=0
    _
  %s7 = ssub.s32 1, %s5
  %s8 = scalar_select 0, %s7, %s5
  // Predicated region
  $region2: #{tpu_custom_call.1} parent=0 // pred_check
    _
  $region3: #{tpu_custom_call.1} parent=0 // pred_check_branch
    %10 = sbr.rel (0) target = $region5
  $region4: #{tpu_custom_call.1} parent=0 // pred_region
    _
  $region5: #{tpu_custom_call.1} parent=0 // pred_fallthru
    _
  // Predicated region
  $region6: #{tpu_custom_call.1} parent=0 // pred_check
    _
  $region7: #{tpu_custom_call.1} parent=0 // pred_check_branch
    %12 = sbr.rel (0) target = $region9
  $region8: #{tpu_custom_call.1} parent=0 // pred_region
    _
  $region9: #{tpu_custom_call.1} parent=0 // pred_fallthru
    _
  // Predicated region
  $region10: #{tpu_custom_call.1} parent=0 // pred_check
    _
  $region11: #{tpu_custom_call.1} parent=0 // pred_check_branch
    %14 = sbr.rel (0) target = $region13
  $region12: #{tpu_custom_call.1} parent=0 // pred_region
    _
  $region13: #{tpu_custom_call.1} parent=0 // pred_fallthru
    _
  // Predicated region
  $region14: #{tpu_custom_call.1} parent=0 // pred_check
    _
  $region15: #{tpu_custom_call.1} parent=0 // pred_check_branch
    %16 = sbr.rel (0) target = $region17
  $region16: #{tpu_custom_call.1} parent=0 // pred_region
    _
  $region17: #{tpu_custom_call.1} parent=0 // pred_fallthru
    _
  %v17 = vld [vmem:[%s0] sm:$0xff]
  %v18 = vld [vmem:[%s1] sm:$0xf]
  %v19 = vld [vmem:[%s3] sm:$0x1]
  %v20 = vlaneseq
  %v21 = vshrl.u32 %v20, 7
  %v22 = vsub.s32 0, %v21
  %v23 = vrot.slane %v19, %v22
  %vm24 = vcmask 31744
  %v26 = vsel %vm24, %v17, 0
  %vm28 = vcmask 1043456
  %v30 = vsel %vm28, %v18, 0
  %32 = vmatprep.subr.mxu0 0.0
  %33 = vmatpush1.msra.mxu0 0.0
  %34 = vmatprep.subr.mxu0 0.0
  %35 = vmatpush1.msra.mxu0 0.0
  %36 = vmatprep.subr.mxu0 0.0
  %37 = vmatpush1.msra.mxu0 0.0
  %38 = vmatprep.subr.mxu0 0.0
  %39 = vmatpush1.msra.mxu0 0.0
  %40 = vmatprep.subr.mxu0 0.0
  %41 = vmatpush1.msra.mxu0 0.0
  %42 = vmatprep.subr.mxu0 0.0
  %43 = vmatpush1.msra.mxu0 0.0
  %44 = vmatprep.subr.mxu0 0.0
  %45 = vmatpush1.msra.mxu0 0.0
  %46 = vmatprep.subr.mxu0 0.0
  %47 = vmatpush1.msra.mxu0 0.0
  %48 = vmatprep.subr.mxu0 0.0
  %49 = vmatpush1.msra.mxu0 0.0
  %50 = vmatprep.subr.mxu0 0.0
  %51 = vmatpush1.msra.mxu0 0.0
  %52 = vmatprep.subr.mxu0 0.0
  %53 = vmatpush1.msra.mxu0 0.0
  %54 = vmatprep.subr.mxu0 0.0
  %55 = vmatpush1.msra.mxu0 0.0
  %56 = vmatprep.subr.mxu0 0.0
  %57 = vmatpush1.msra.mxu0 0.0
  %58 = vmatprep.subr.mxu0 0.0
  %59 = vmatpush1.msra.mxu0 0.0
  %60 = vmatprep.subr.mxu0 0.0
  %61 = vmatpush1.msra.mxu0 0.0
  %62 = vmatprep.subr.mxu0 0.0
  %63 = vmatpush1.msra.mxu0 %v30
  %64 = vmatprep.subr.mxu0 0.0
  %65 = vmatpush2.msra.mxu0 0.0
  %66 = vmatprep.subr.mxu0 0.0
  %67 = vmatpush2.msra.mxu0 0.0
  %68 = vmatprep.subr.mxu0 0.0
  %69 = vmatpush2.msra.mxu0 0.0
  %70 = vmatprep.subr.mxu0 0.0
  %71 = vmatpush2.msra.mxu0 0.0
  %72 = vmatprep.subr.mxu0 0.0
  %73 = vmatpush2.msra.mxu0 0.0
  %74 = vmatprep.subr.mxu0 0.0
  %75 = vmatpush2.msra.mxu0 0.0
  %76 = vmatprep.subr.mxu0 0.0
  %77 = vmatpush2.msra.mxu0 0.0
  %78 = vmatprep.subr.mxu0 0.0
  %79 = vmatpush2.msra.mxu0 0.0
  %80 = vmatprep.subr.mxu0 0.0
  %81 = vmatpush2.msra.mxu0 0.0
  %82 = vmatprep.subr.mxu0 0.0
  %83 = vmatpush2.msra.mxu0 0.0
  %84 = vmatprep.subr.mxu0 0.0
  %85 = vmatpush2.msra.mxu0 0.0
  %86 = vmatprep.subr.mxu0 0.0
  %87 = vmatpush2.msra.mxu0 0.0
  %88 = vmatprep.subr.mxu0 0.0
  %89 = vmatpush2.msra.mxu0 0.0
  %90 = vmatprep.subr.mxu0 0.0
  %91 = vmatpush2.msra.mxu0 0.0
  %92 = vmatprep.subr.mxu0 0.0
  %93 = vmatpush2.msra.mxu0 0.0
  %94 = vmatprep.subr.mxu0 0.0
  %95 = vmatpush2.msra.mxu0 0.0
  %96 = vmatprep.mubr.f32.mxu0 0.0
  %97 = vmatmul.mubr.f32.gmra.mxu0 %v26
  %v98 = vpop.f32.mrf.mxu0
  %v99 = vadd.f32 %v23, %v98
  %v100 = vpop.f32.mrf.mxu0
  %101 = vdwg.mxu0
  %v102 = vmax.f32 %v99, 0.0
  %v103 = vld [vmem:[%s2] sm:$0xff]
  %v104 = vld [vmem:[%s2 + $0x8] sm:$0xff]
  %v105 = vld [vmem:[%s2 + $0x10] sm:$0xff]
  %v106 = vld [vmem:[%s2 + $0x18] sm:$0xff]
  %v107 = vld [vmem:[%s2 + $0x20] sm:$0xff]
  %v108 = vld [vmem:[%s2 + $0x28] sm:$0xff]
  %v109 = vld [vmem:[%s2 + $0x30] sm:$0xff]
  %v110 = vld [vmem:[%s2 + $0x38] sm:$0xff]
  %v111 = vld [vmem:[%s2 + $0x40] sm:$0xff]
  %v112 = vld [vmem:[%s2 + $0x48] sm:$0xff]
  %v113 = vld [vmem:[%s2 + $0x50] sm:$0xff]
  %v114 = vld [vmem:[%s2 + $0x58] sm:$0xff]
  %v115 = vld [vmem:[%s2 + $0x60] sm:$0xff]
  %v116 = vld [vmem:[%s2 + $0x68] sm:$0xff]
  %v117 = vld [vmem:[%s2 + $0x70] sm:$0xff]
  %v118 = vld [vmem:[%s2 + $0x78] sm:$0xff]
  %v119 = vld [vmem:[%s3 + $0x1] sm:$0x1]
  %v120 = vlaneseq
  %v121 = vshrl.u32 %v120, 7
  %v122 = vsub.s32 0, %v121
  %v123 = vrot.slane %v119, %v122
  %124 = vmatprep.subr.mxu0 0.0
  %125 = vmatpush1.msra.mxu0 %v118
  %126 = vmatprep.subr.mxu0 0.0
  %127 = vmatpush1.msra.mxu0 %v117
  %128 = vmatprep.subr.mxu0 0.0
  %129 = vmatpush1.msra.mxu0 %v116
  %130 = vmatprep.subr.mxu0 0.0
  %131 = vmatpush1.msra.mxu0 %v115
  %132 = vmatprep.subr.mxu0 0.0
  %133 = vmatpush1.msra.mxu0 %v114
  %134 = vmatprep.subr.mxu0 0.0
  %135 = vmatpush1.msra.mxu0 %v113
  %136 = vmatprep.subr.mxu0 0.0
  %137 = vmatpush1.msra.mxu0 %v112
  %138 = vmatprep.subr.mxu0 0.0
  %139 = vmatpush1.msra.mxu0 %v111
  %140 = vmatprep.subr.mxu0 0.0
  %141 = vmatpush1.msra.mxu0 %v110
  %142 = vmatprep.subr.mxu0 0.0
  %143 = vmatpush1.msra.mxu0 %v109
  %144 = vmatprep.subr.mxu0 0.0
  %145 = vmatpush1.msra.mxu0 %v108
  %146 = vmatprep.subr.mxu0 0.0
  %147 = vmatpush1.msra.mxu0 %v107
  %148 = vmatprep.subr.mxu0 0.0
  %149 = vmatpush1.msra.mxu0 %v106
  %150 = vmatprep.subr.mxu0 0.0
  %151 = vmatpush1.msra.mxu0 %v105
  %152 = vmatprep.subr.mxu0 0.0
  %153 = vmatpush1.msra.mxu0 %v104
  %154 = vmatprep.subr.mxu0 0.0
  %155 = vmatpush1.msra.mxu0 %v103
  %156 = vmatprep.subr.mxu0 0.0
  %157 = vmatpush2.msra.mxu0 0.0
  %158 = vmatprep.subr.mxu0 0.0
  %159 = vmatpush2.msra.mxu0 0.0
  %160 = vmatprep.subr.mxu0 0.0
  %161 = vmatpush2.msra.mxu0 0.0
  %162 = vmatprep.subr.mxu0 0.0
  %163 = vmatpush2.msra.mxu0 0.0
  %164 = vmatprep.subr.mxu0 0.0
  %165 = vmatpush2.msra.mxu0 0.0
  %166 = vmatprep.subr.mxu0 0.0
  %167 = vmatpush2.msra.mxu0 0.0
  %168 = vmatprep.subr.mxu0 0.0
  %169 = vmatpush2.msra.mxu0 0.0
  %170 = vmatprep.subr.mxu0 0.0
  %171 = vmatpush2.msra.mxu0 0.0
  %172 = vmatprep.subr.mxu0 0.0
  %173 = vmatpush2.msra.mxu0 0.0
  %174 = vmatprep.subr.mxu0 0.0
  %175 = vmatpush2.msra.mxu0 0.0
  %176 = vmatprep.subr.mxu0 0.0
  %177 = vmatpush2.msra.mxu0 0.0
  %178 = vmatprep.subr.mxu0 0.0
  %179 = vmatpush2.msra.mxu0 0.0
  %180 = vmatprep.subr.mxu0 0.0
  %181 = vmatpush2.msra.mxu0 0.0
  %182 = vmatprep.subr.mxu0 0.0
  %183 = vmatpush2.msra.mxu0 0.0
  %184 = vmatprep.subr.mxu0 0.0
  %185 = vmatpush2.msra.mxu0 0.0
  %186 = vmatprep.subr.mxu0 0.0
  %187 = vmatpush2.msra.mxu0 0.0
  %188 = vmatprep.mubr.f32.mxu0 0.0
  %189 = vmatmul.mubr.f32.gmra.mxu0 %v102
  %v190 = vpop.f32.mrf.mxu0
  %v191 = vadd.f32 %v123, %v190
  %v192 = vpop.f32.mrf.mxu0
  %193 = vdwg.mxu0
  %vm194 = vcmask 15360
  %195 = vst.msk [vmem:[%s4] sm:$0xff] %vm194, %v191
  // Predicated region
  $region18: #{tpu_custom_call.1} parent=0 // pred_check
    _
  $region19: #{tpu_custom_call.1} parent=0 // pred_check_branch
    %197 = sbr.rel (0) target = $region21
  $region20: #{tpu_custom_call.1} parent=0 // pred_region
    _
  $region21: #{tpu_custom_call.1} parent=0 // pred_fallthru
    _
  // Predicated region
  $region22: #{tpu_custom_call.1} parent=0 // pred_check
    _
  $region23: #{tpu_custom_call.1} parent=0 // pred_check_branch
    %199 = sbr.rel (0) target = $region25
  $region24: #{tpu_custom_call.1} parent=0 // pred_region
    _
  $region25: #{tpu_custom_call.1} parent=0 // pred_fallthru
    _

</llo_original>
